<compile_context>
chip_gen: v7x
topology: tpu7x:2x2x1
jax: 0.10.0
libtpu: 0.0.40
codegen_flags: <defaults>
</compile_context>

<pallas_src>
import functools

import jax
import jax.numpy as jnp
from jax.experimental import pallas as pl
from jax.experimental.pallas import tpu as pltpu

LANES = 128
# ~4 MiB per input block in its native (widest) dtype: 8192 f32 rows / 16384 bf16 rows.
# 2 inputs x 2 pipeline buffers x 4 MiB = 16 MiB, comfortably inside the explicit
# 32 MiB VMEM budget now that the accumulator is a single (8,128) scratch.
MAX_BLOCK_BYTES = 4 * 1024 * 1024
VMEM_LIMIT_BYTES = 32 * 1024 * 1024


def _make_mse_kernel(block_rows: int, steps_per_split: int, rows_total: int,
                     nblocks: int, has_pad: bool):
    """Kernel accumulating sum((x-y)^2) into an (8,128) f32 VMEM scratch.

    Output per split is a single (8,128) block written only on the split's last step.
    """
    groups = block_rows // 8  # block_rows is a multiple of the sublane packing (>= 8)
    has_overhang = (rows_total % block_rows) != 0  # static

    def _partial(x_ref, y_ref, g, masked: bool):
        d = x_ref[...].astype(jnp.float32) - y_ref[...].astype(jnp.float32)
        if masked:
            # Edge block overhangs the array: zero out-of-range rows (their contents
            # are undefined) BEFORE squaring.
            row0 = g * block_rows
            row_ids = jax.lax.broadcasted_iota(jnp.int32, (block_rows, LANES), 0) + row0
            d = jnp.where(row_ids < rows_total, d, 0.0)
        sq = d * d
        # Sublane-group reduction: (groups, 8, 128) summed over axis 0 is a pure
        # vreg-to-vreg vadd tree (VPU only, no XLU).
        return jnp.sum(sq.reshape(groups, 8, LANES), axis=0)

    def kernel(x_ref, y_ref, o_ref, acc_ref):
        i = pl.program_id(0)
        j = pl.program_id(1)
        g = i * steps_per_split + j  # global block index

        @pl.when(j == 0)
        def _init():
            acc_ref[...] = jnp.zeros_like(acc_ref)

        if not has_overhang and not has_pad:
            # Common case: every step is a full, in-range block -> unmasked hot loop.
            acc_ref[...] += _partial(x_ref, y_ref, g, False)
        else:
            last = nblocks - 1

            @pl.when(g < last)
            def _main():
                acc_ref[...] += _partial(x_ref, y_ref, g, False)

            @pl.when(g == last)
            def _edge():
                acc_ref[...] += _partial(x_ref, y_ref, g, has_overhang)

            # g > last (padded final step of the short split when nblocks is odd):
            # contributes nothing.

        @pl.when(j == steps_per_split - 1)
        def _finalize():
            o_ref[...] = acc_ref[...]

    return kernel


def _sum_sq_diff_pallas(xs, ys, rows: int):
    """sum((xs - ys)^2) over a (rows, 128) lane-dense slab via Pallas."""
    it_x = jnp.dtype(xs.dtype).itemsize
    it_y = jnp.dtype(ys.dtype).itemsize
    # Largest sublane-packing requirement of the two inputs (min itemsize wins):
    # f32 -> 8, bf16 -> 16, int8/fp8 -> 32.
    sub = 8 * max(1, 4 // min(it_x, it_y))

    # Byte-budgeted block: ~MAX_BLOCK_BYTES per input in the widest native dtype.
    budget_rows = (MAX_BLOCK_BYTES // (LANES * max(it_x, it_y))) // sub * sub
    block_rows = min(max(budget_rows, sub), (rows // sub) * sub)

    nblocks = -(-rows // block_rows)
    # Always expose a 2-way "parallel" leading axis when there are >= 2 blocks:
    # v7x megacore keeps both TensorCores busy; on 1-TC chips the only cost is one
    # extra 4 KiB partial block (and possibly one skipped padded step).
    n_splits = 2 if nblocks >= 2 else 1
    steps = -(-nblocks // n_splits)
    has_pad = (n_splits * steps) > nblocks  # at most one padded grid step

    kernel = _make_mse_kernel(block_rows, steps, rows, nblocks, has_pad)

    if has_pad:
        # Clamp so the padded step re-reads the last valid block (its contribution is
        # skipped in-kernel) instead of issuing an out-of-range DMA.
        def in_idx(i, j):
            return (jnp.minimum(i * steps + j, nblocks - 1), 0)
    else:
        def in_idx(i, j):
            return (i * steps + j, 0)

    n_elems = rows * LANES
    cost = pl.CostEstimate(
        flops=3 * n_elems,                       # sub, mul, add per element
        transcendentals=0,
        bytes_accessed=n_elems * (it_x + it_y) + n_splits * 8 * LANES * 4,
    )

    partials = pl.pallas_call(
        kernel,
        out_shape=jax.ShapeDtypeStruct((n_splits, 8, LANES), jnp.float32),
        grid_spec=pltpu.PrefetchScalarGridSpec(
            num_scalar_prefetch=0,
            grid=(n_splits, steps),
            in_specs=[
                pl.BlockSpec((block_rows, LANES), in_idx),
                pl.BlockSpec((block_rows, LANES), in_idx),
            ],
            out_specs=pl.BlockSpec((None, 8, LANES), lambda i, j: (i, 0, 0)),
            scratch_shapes=[pltpu.VMEM((8, LANES), jnp.float32)],
        ),
        compiler_params=pltpu.CompilerParams(
            dimension_semantics=("parallel", "arbitrary"),
            vmem_limit_bytes=VMEM_LIMIT_BYTES,
        ),
        cost_estimate=cost,
    )(xs, ys)

    # One final reduction over the tiny (n_splits, 8, 128) partial slab, in plain JAX.
    return jnp.sum(partials, dtype=jnp.float32)


@functools.partial(jax.jit, static_argnames=("distortion_type",))
def distortion(x, y, distortion_type: str = "MSE"):
    if distortion_type != "MSE":
        # TODO(synk): MS-SSIM / LPIPS paths not implemented (pretrained weights / ms_ssim lib).
        raise NotImplementedError(distortion_type)

    assert x.shape == y.shape, "MSELoss requires matching shapes"
    n = x.size

    # Flatten only (contiguous row-major reshape, no upcast, no HBM pad copy).
    flat_x = x.reshape(-1)
    flat_y = y.reshape(-1)

    # Min itemsize -> largest sublane-packing requirement across both inputs.
    sub = 8 * max(1, 4 // min(jnp.dtype(x.dtype).itemsize, jnp.dtype(y.dtype).itemsize))

    rows = n // LANES
    rem = n - rows * LANES

    sq_sum = jnp.float32(0.0)
    if rows >= sub:
        n_main = rows * LANES
        if rem == 0:
            xs = flat_x.reshape(rows, LANES)  # zero-copy lane-dense view
            ys = flat_y.reshape(rows, LANES)
        else:
            # Non-lane-aligned element count: kernel handles the aligned prefix,
            # the (<128-element) tail is summed in plain JAX below.
            xs = flat_x[:n_main].reshape(rows, LANES)
            ys = flat_y[:n_main].reshape(rows, LANES)
        sq_sum = _sum_sq_diff_pallas(xs, ys, rows)
    else:
        n_main = 0  # too small for even one vreg-aligned tile -> all in plain JAX

    if n_main < n:
        tx = flat_x[n_main:].astype(jnp.float32)
        ty = flat_y[n_main:].astype(jnp.float32)
        sq_sum = sq_sum + jnp.sum((tx - ty) ** 2)

    return sq_sum / jnp.float32(n)


if __name__ == "__main__":
    key = jax.random.PRNGKey(0)
    kx, ky = jax.random.split(key)
    # NCHW, same convention as the PyTorch module's conv-style inputs.
    x = jax.random.uniform(kx, (2, 4, 16, 16), dtype=jnp.float32)
    y = jax.random.uniform(ky, (2, 4, 16, 16), dtype=jnp.float32)

    out = distortion(x, y, distortion_type="MSE")
    out = jax.block_until_ready(out)

    # Reference check (plain JAX == nn.MSELoss semantics).
    ref = jnp.mean((x - y) ** 2)
    assert jnp.allclose(out, ref, rtol=1e-5, atol=1e-6), (out, ref)

    # Exercise a larger, odd-block-count, non-aligned shape too (multi-step pipeline,
    # 2-way split with padded step, edge-block mask, JAX tail).
    x2 = jax.random.uniform(kx, (3, 3, 181, 181), dtype=jnp.float32)
    y2 = jax.random.uniform(ky, (3, 3, 181, 181), dtype=jnp.float32)
    out2 = jax.block_until_ready(distortion(x2, y2, distortion_type="MSE"))
    ref2 = jnp.mean((x2 - y2) ** 2)
    assert jnp.allclose(out2, ref2, rtol=1e-5, atol=1e-6), (out2, ref2)

    print("KERNEL_OK")
</pallas_src>

<mosaic_0001>
module attributes {stable_mosaic.version = 11 : i64} {
  func.func @kernel(%arg0: i32, %arg1: i32, %arg2: memref<16x128xf32, #tpu.memory_space<vmem>>, %arg3: memref<16x128xf32, #tpu.memory_space<vmem>>, %arg4: memref<1x8x128xf32, #tpu.memory_space<vmem>>, %arg5: memref<8x128xf32, #tpu.memory_space<vmem>>) attributes {dimension_semantics = [#tpu.dimension_semantics<parallel>, #tpu.dimension_semantics<arbitrary>], iteration_bounds = array<i64: 1, 1>, scalar_prefetch = 0 : i64, scratch_operands = 1 : i64, tpu.core_type = #tpu.core_type<tc>, window_params = [{transform_indices = @transform_0, window_bounds = array<i64: 16, 128>}, {transform_indices = @transform_1, window_bounds = array<i64: 16, 128>}, {transform_indices = @transform_2, window_bounds = array<i64: 1, 8, 128>}]} {
    %c0_i32 = arith.constant 0 : i32
    %0 = arith.cmpi eq, %arg1, %c0_i32 : i32
    %1 = arith.extui %0 : i1 to i32
    %c0_i32_0 = arith.constant 0 : i32
    %2 = arith.cmpi ne, %1, %c0_i32_0 : i32
    scf.if %2 {
      %cst_10 = arith.constant 0.000000e+00 : f32
      %15 = vector.broadcast %cst_10 : f32 to vector<8x128xf32>
      %c0_11 = arith.constant 0 : index
      %c0_12 = arith.constant 0 : index
      %16 = vector.load %arg5[%c0_11, %c0_12] : memref<8x128xf32, #tpu.memory_space<vmem>>, vector<8x128xf32>
      tpu.vector_store %arg5[%c0_11, %c0_12], %15 {strides = array<i32>} : memref<8x128xf32, #tpu.memory_space<vmem>>, vector<8x128xf32>,
    } else {
    }
    %c0 = arith.constant 0 : index
    %c0_1 = arith.constant 0 : index
    %3 = vector.load %arg5[%c0, %c0_1] : memref<8x128xf32, #tpu.memory_space<vmem>>, vector<8x128xf32>
    %c0_2 = arith.constant 0 : index
    %c0_3 = arith.constant 0 : index
    %4 = vector.load %arg2[%c0_2, %c0_3] : memref<16x128xf32, #tpu.memory_space<vmem>>, vector<16x128xf32>
    %c0_4 = arith.constant 0 : index
    %c0_5 = arith.constant 0 : index
    %5 = vector.load %arg3[%c0_4, %c0_5] : memref<16x128xf32, #tpu.memory_space<vmem>>, vector<16x128xf32>
    %6 = arith.subf %4, %5 : vector<16x128xf32>
    %7 = arith.mulf %6, %6 : vector<16x128xf32>
    %8 = vector.shape_cast %7 : vector<16x128xf32> to vector<2x8x128xf32>
    %cst = arith.constant dense<0.000000e+00> : vector<8x128xf32>
    %9 = vector.multi_reduction <add>, %8, %cst [0] : vector<2x8x128xf32> to vector<8x128xf32>
    %10 = arith.addf %3, %9 : vector<8x128xf32>
    %c0_6 = arith.constant 0 : index
    %c0_7 = arith.constant 0 : index
    %11 = vector.load %arg5[%c0_6, %c0_7] : memref<8x128xf32, #tpu.memory_space<vmem>>, vector<8x128xf32>
    tpu.vector_store %arg5[%c0_6, %c0_7], %10 {strides = array<i32>} : memref<8x128xf32, #tpu.memory_space<vmem>>, vector<8x128xf32>,
    %c0_i32_8 = arith.constant 0 : i32
    %12 = arith.cmpi eq, %arg1, %c0_i32_8 : i32
    %13 = arith.extui %12 : i1 to i32
    %c0_i32_9 = arith.constant 0 : i32
    %14 = arith.cmpi ne, %13, %c0_i32_9 : i32
    scf.if %14 {
      %c0_10 = arith.constant 0 : index
      %c0_11 = arith.constant 0 : index
      %15 = vector.load %arg5[%c0_10, %c0_11] : memref<8x128xf32, #tpu.memory_space<vmem>>, vector<8x128xf32>
      %c0_12 = arith.constant 0 : index
      %c0_13 = arith.constant 0 : index
      %c0_14 = arith.constant 0 : index
      %16 = vector.load %arg4[%c0_12, %c0_13, %c0_14] : memref<1x8x128xf32, #tpu.memory_space<vmem>>, vector<1x8x128xf32>
      %17 = vector.shape_cast %16 : vector<1x8x128xf32> to vector<8x128xf32>
      %18 = vector.shape_cast %15 : vector<8x128xf32> to vector<1x8x128xf32>
      tpu.vector_store %arg4[%c0_12, %c0_13, %c0_14], %18 {strides = array<i32>} : memref<1x8x128xf32, #tpu.memory_space<vmem>>, vector<1x8x128xf32>,
    } else {
    }
    return
  }
  func.func @transform_0(%arg0: i32, %arg1: i32) -> (i32, i32) {
    %c1_i32 = arith.constant 1 : i32
    %0 = arith.muli %arg0, %c1_i32 : i32
    %1 = arith.addi %0, %arg1 : i32
    %c0_i32 = arith.constant 0 : i32
    %c0_i32_0 = arith.constant 0 : i32
    return %1, %c0_i32 : i32, i32
  }
  func.func @transform_1(%arg0: i32, %arg1: i32) -> (i32, i32) {
    %c1_i32 = arith.constant 1 : i32
    %0 = arith.muli %arg0, %c1_i32 : i32
    %1 = arith.addi %0, %arg1 : i32
    %c0_i32 = arith.constant 0 : i32
    %c0_i32_0 = arith.constant 0 : i32
    return %1, %c0_i32 : i32, i32
  }
  func.func @transform_2(%arg0: i32, %arg1: i32) -> (i32, i32, i32) {
    %c0_i32 = arith.constant 0 : i32
    %c0_i32_0 = arith.constant 0 : i32
    %c0_i32_1 = arith.constant 0 : i32
    return %arg0, %c0_i32, %c0_i32_0 : i32, i32, i32
  }
}

</mosaic_0001>

<llo_original>
// kernel: distortion.1
$region0: #{distortion.1}
  #allocation0 [shape = 'u32[]', space=smem, size = 0x4, offset = 0x4, fixed_abs, tag = 'smem constant byte address 0x4 - core index']
  #allocation1 [shape = 'u32[144,128]{1,0:T(1,128)}', space=vmem, size = 0x12000, scoped, tag = 'internal scratch']
  #allocation2 [shape = 'f32[8,128]{1,0:T(8,128)}', space=vmem, size = 0x1000, scoped, tag = 'scratch operand']
  %s0 = inlined_call_operand.vmem [shape: f32[16,128], index: 0, kind: input, shape index: {}]
  %s1 = inlined_call_operand.vmem [shape: f32[16,128], index: 1, kind: input, shape index: {}]
  %s2 = inlined_call_operand.vmem [shape: f32[1,8,128], index: 2, kind: output, shape index: {}]
  %s3 = sld [smem:[#allocation0]]
  $region26: #{distortion.1} parent=0
    _
  %s5 = ssub.s32 1, %s3
  %s6 = scalar_select 0, %s5, %s3
  // Predicated region
  $region2: #{distortion.1} parent=0 // pred_check
    _
  $region3: #{distortion.1} parent=0 // pred_check_branch
    %8 = sbr.rel (0) target = $region5
  $region4: #{distortion.1} parent=0 // pred_region
    %s9 = sadd.s32 0, 0
    %s10 = smul.u32 2, %s9
    %p11 = scmp.lt.s32.totalorder %s10, 1
    %s12 = scalar_select %p11, %s10, 1
    %s13 = smul.addr %s12, 8
    %s14 = scalar_lea.vmem %s0, %s13
    %s15 = sadd.s32 0, 0
    %s16 = smul.u32 2, %s15
  $region5: #{distortion.1} parent=0 // pred_fallthru
    _
  // Predicated region
  $region6: #{distortion.1} parent=0 // pred_check
    _
  $region7: #{distortion.1} parent=0 // pred_check_branch
    %18 = sbr.rel (0) target = $region9
  $region8: #{distortion.1} parent=0 // pred_region
    %s19 = sadd.s32 0, 0
    %s20 = smul.u32 2, %s19
    %p21 = scmp.lt.s32.totalorder %s20, 1
    %s22 = scalar_select %p21, %s20, 1
    %s23 = smul.addr %s22, 8
    %s24 = scalar_lea.vmem %s1, %s23
    %s25 = sadd.s32 0, 0
    %s26 = smul.u32 2, %s25
  $region9: #{distortion.1} parent=0 // pred_fallthru
    _
  %s27 = sadd.s32 0, 0
  %s28 = smul.u32 2, %s27
  %p29 = scmp.lt.s32.totalorder %s28, 1
  %s30 = scalar_select %p29, %s28, 1
  %s31 = smul.addr %s30, 8
  %s32 = scalar_lea.vmem %s0, %s31
  %s33 = sadd.s32 0, 0
  %s34 = smul.u32 2, %s33
  %p35 = scmp.lt.s32.totalorder %s34, 1
  %s36 = scalar_select %p35, %s34, 1
  %s37 = smul.addr %s36, 8
  %s38 = scalar_lea.vmem %s1, %s37
  %s39 = sadd.s32 0, 0
  %s40 = smul.u32 2, %s39
  %p41 = scmp.lt.s32.totalorder %s40, 1
  %s42 = scalar_select %p41, %s40, 1
  %s43 = smul.addr %s42, 8
  %s44 = scalar_lea.vmem %s0, %s43
  %s45 = sadd.s32 0, 0
  %s46 = smul.u32 2, %s45
  %s47 = sadd.s32 0, 0
  %s48 = smul.u32 2, %s47
  %p49 = scmp.lt.s32.totalorder %s48, 1
  %s50 = scalar_select %p49, %s48, 1
  %s51 = smul.addr %s50, 8
  %s52 = scalar_lea.vmem %s1, %s51
  %s53 = sadd.s32 0, 0
  %s54 = smul.u32 2, %s53
  %p55 = scmp.eq.s32.totalorder 0, 0
  // Predicated region
  $region10: #{distortion.1} parent=0 // pred_check
    %p56 = pneg %p55
  $region11: #{distortion.1} parent=0 // pred_check_branch
    %58 = sbr.rel (%p56) target = $region13
  $region12: #{distortion.1} parent=0 // pred_region
    %59 = vst [vmem:[#allocation2] sm:$0xff] 0.0
  $region13: #{distortion.1} parent=0 // pred_fallthru
    _
  %v60 = vld [vmem:[#allocation2] sm:$0xff]
  %v61 = vld [vmem:[%s44] sm:$0xff]
  %v62 = vld [vmem:[%s44 + $0x8] sm:$0xff]
  %v63 = vld [vmem:[%s52] sm:$0xff]
  %v64 = vld [vmem:[%s52 + $0x8] sm:$0xff]
  %v65 = vsub.f32 %v61, %v63
  %v66 = vsub.f32 %v62, %v64
  %v67 = vmul.f32 %v65, %v65
  %v68 = vmul.f32 %v66, %v66
  %v69 = vadd.f32 %v67, %v68
  %v70 = vadd.f32 %v60, %v69
  %71 = vst [vmem:[#allocation2] sm:$0xff] %v70
  // Predicated region
  $region14: #{distortion.1} parent=0 // pred_check
    %p72 = pneg %p55
  $region15: #{distortion.1} parent=0 // pred_check_branch
    %74 = sbr.rel (%p72) target = $region17
  $region16: #{distortion.1} parent=0 // pred_region
    %v75 = vld [vmem:[#allocation2] sm:$0xff]
    %76 = vst [vmem:[%s2] sm:$0xff] %v75
  $region17: #{distortion.1} parent=0 // pred_fallthru
    _
  // Predicated region
  $region18: #{distortion.1} parent=0 // pred_check
    _
  $region19: #{distortion.1} parent=0 // pred_check_branch
    %78 = sbr.rel (0) target = $region21
  $region20: #{distortion.1} parent=0 // pred_region
    _
  $region21: #{distortion.1} parent=0 // pred_fallthru
    _
  // Predicated region
  $region22: #{distortion.1} parent=0 // pred_check
    _
  $region23: #{distortion.1} parent=0 // pred_check_branch
    %80 = sbr.rel (0) target = $region25
  $region24: #{distortion.1} parent=0 // pred_region
    _
  $region25: #{distortion.1} parent=0 // pred_fallthru
    _

</llo_original>
